<compile_context>
chip_gen: v7x
topology: tpu7x:2x2x1
jax: 0.10.0
libtpu: 0.0.40
codegen_flags: <defaults>
</compile_context>

<pallas_src>
import jax
import jax.numpy as jnp
from jax.experimental import pallas as pl
from jax.experimental.pallas import tpu as pltpu


def _make_neumf_kernel(n_hidden_layers):
    """Build a fused NeuMF forward kernel for a fixed number of MLP layers.

    Ref order: mf_t, mlp_t, (W_i, b_i) * n_hidden_layers, W_out_mf, W_out_mlp, b_out, out_ref
      mf_t  : [n_emb,      TILE_B]  bf16   (batch on lanes)
      mlp_t : [layers[0],  TILE_B]  bf16
      W_i   : [out_i, in_i]         bf16   (PyTorch nn.Linear layout)
      b_i   : [out_i, 1]            f32
      W_out_mf / W_out_mlp : [1, n_emb] / [1, layers[-1]]  bf16
      b_out : [1, 1]                f32
      out   : [1, TILE_B]           f32
    """

    def kernel(*refs):
        mf_ref, mlp_ref = refs[0], refs[1]
        idx = 2

        # MLP tower: Linear -> ReLU (-> Dropout, identity at inference).
        x = mlp_ref[...]                       # bf16 [in, TILE_B]
        for _ in range(n_hidden_layers):
            w = refs[idx][...]                 # bf16 [out, in]
            b = refs[idx + 1][...]             # f32  [out, 1]
            idx += 2
            y = jnp.dot(w, x, preferred_element_type=jnp.float32) + b
            y = jnp.maximum(y, 0.0)            # f32 bias/ReLU (v5e-safe)
            x = y.astype(jnp.bfloat16)         # bf16 operand for the next MXU op
            # TODO(synk): dropout is a training-time op; inference forward treats it as identity.

        # Output layer on cat([mf, mlp_out]) -> split weight, sum the two matmuls.
        w_out_mf = refs[idx][...]              # bf16 [1, n_emb]
        w_out_mlp = refs[idx + 1][...]         # bf16 [1, layers[-1]]
        b_out = refs[idx + 2][...]             # f32  [1, 1]
        out_ref = refs[idx + 3]                # f32  [1, TILE_B]

        logits = (
            jnp.dot(w_out_mf, mf_ref[...], preferred_element_type=jnp.float32)
            + jnp.dot(w_out_mlp, x, preferred_element_type=jnp.float32)
            + b_out
        )
        # sigmoid: exp + approximate reciprocal both run on the EUP slot.
        out_ref[...] = pl.reciprocal(1.0 + jnp.exp(-logits), approx=True)

    return kernel


def neumf_forward(mf_emb, mlp_emb, mlp_weights, mlp_biases, w_out, b_out, n_emb,
                  *, tile_b=512):
    """Fused NeuMF forward.

    mf_emb : [B, n_emb] f32        mlp_emb: [B, layers[0]] f32
    mlp_weights[i]: [out_i, in_i]  mlp_biases[i]: [out_i, 1]
    w_out  : [1, n_emb + layers[-1]]   b_out: [1, 1]
    Returns [B, 1] f32 predictions.
    """
    batch = mf_emb.shape[0]
    layers0 = mlp_emb.shape[1]
    n_hidden = len(mlp_weights)

    grid_b = pl.cdiv(batch, tile_b)
    b_pad = grid_b * tile_b
    pad = b_pad - batch

    # Batch-on-lanes layout + bf16 embeddings (halves HBM traffic of the dominant stream).
    mf_t = jnp.pad(mf_emb, ((0, pad), (0, 0))).T.astype(jnp.bfloat16)      # [n_emb, B_pad]
    mlp_t = jnp.pad(mlp_emb, ((0, pad), (0, 0))).T.astype(jnp.bfloat16)    # [layers0, B_pad]

    # Split output weight into mf / mlp halves.
    w_out_mf = w_out[:, :n_emb].astype(jnp.bfloat16)                       # [1, n_emb]
    w_out_mlp = w_out[:, n_emb:].astype(jnp.bfloat16)                      # [1, layers[-1]]

    const_map = lambda i: (0, 0)   # weights/biases resident across batch tiles

    operands = [mf_t, mlp_t]
    in_specs = [
        pl.BlockSpec((n_emb, tile_b), lambda i: (0, i)),
        pl.BlockSpec((layers0, tile_b), lambda i: (0, i)),
    ]
    for w, b in zip(mlp_weights, mlp_biases):
        w_bf = w.astype(jnp.bfloat16)
        b_f32 = b.astype(jnp.float32)
        operands += [w_bf, b_f32]
        in_specs += [pl.BlockSpec(w_bf.shape, const_map),
                     pl.BlockSpec(b_f32.shape, const_map)]
    for p in (w_out_mf, w_out_mlp, b_out.astype(jnp.float32)):
        operands.append(p)
        in_specs.append(pl.BlockSpec(p.shape, const_map))

    # VMEM budget: double-buffered embedding/output tiles + resident params + headroom.
    tile_bytes = (n_emb + layers0) * tile_b * 2 + tile_b * 4
    param_bytes = sum(int(p.size) * p.dtype.itemsize for p in operands[2:])
    vmem_limit = int(min(max(4 * tile_bytes + 4 * param_bytes + (2 << 20), 4 << 20),
                         32 << 20))

    kernel = _make_neumf_kernel(n_hidden)

    out_t = pl.pallas_call(
        kernel,
        out_shape=jax.ShapeDtypeStruct((1, b_pad), jnp.float32),
        grid=(grid_b,),
        in_specs=in_specs,
        out_specs=pl.BlockSpec((1, tile_b), lambda i: (0, i)),
        compiler_params=pltpu.CompilerParams(
            dimension_semantics=("parallel",),   # megacore sharding on v7x
            vmem_limit_bytes=vmem_limit,
        ),
    )(*operands)

    return out_t[0, :batch].reshape(batch, 1)


def init_params(key, n_emb, layers):
    """Deterministic init mimicking nn.Linear's U(-1/sqrt(in), 1/sqrt(in)).

    Weights kept in PyTorch layout [out, in]; biases as [out, 1].
    """
    mlp_weights, mlp_biases = [], []
    for i in range(1, len(layers)):
        fan_in, fan_out = layers[i - 1], layers[i]
        bound = 1.0 / (fan_in ** 0.5)
        key, kw, kb = jax.random.split(key, 3)
        w = jax.random.uniform(kw, (fan_out, fan_in), jnp.float32, -bound, bound)
        b = jax.random.uniform(kb, (fan_out, 1), jnp.float32, -bound, bound)
        mlp_weights.append(w)
        mlp_biases.append(b)

    fan_in = n_emb + layers[-1]
    bound = 1.0 / (fan_in ** 0.5)
    key, kw, kb = jax.random.split(key, 3)
    w_out = jax.random.uniform(kw, (1, fan_in), jnp.float32, -bound, bound)
    b_out = jax.random.uniform(kb, (1, 1), jnp.float32, -bound, bound)
    return mlp_weights, mlp_biases, w_out, b_out


def neumf_reference(mf_emb, mlp_emb, mlp_weights, mlp_biases, w_out, b_out):
    """Plain-JAX f32 reference for correctness checking."""
    x = mlp_emb
    for w, b in zip(mlp_weights, mlp_biases):
        x = jnp.maximum(x @ w.T + b.T, 0.0)
    emb = jnp.concatenate([mf_emb, x], axis=1)
    return jax.nn.sigmoid(emb @ w_out.T + b_out.T)


if __name__ == "__main__":
    # Small, module-consistent shapes. batch deliberately not a multiple of the tile
    # so the padding + multi-step grid path is exercised.
    batch = 300
    n_emb = 8
    layers = [16, 32, 16, 8]          # MLP tower: 16 -> 32 -> 16 -> 8
    dropouts = [0.0, 0.0, 0.0]        # identity at inference

    key = jax.random.PRNGKey(0)
    key, k_mf, k_mlp, k_params = jax.random.split(key, 4)

    mf_emb = jax.random.normal(k_mf, (batch, n_emb), jnp.float32)
    mlp_emb = jax.random.normal(k_mlp, (batch, layers[0]), jnp.float32)

    mlp_weights, mlp_biases, w_out, b_out = init_params(k_params, n_emb, layers)

    preds = neumf_forward(mf_emb, mlp_emb, mlp_weights, mlp_biases, w_out, b_out, n_emb,
                          tile_b=128)
    preds = jax.block_until_ready(preds)

    ref = neumf_reference(mf_emb, mlp_emb, mlp_weights, mlp_biases, w_out, b_out)

    assert preds.shape == (batch, 1), preds.shape
    # Tolerance loosened vs the f32 reference because matmul operands are bf16
    # and the sigmoid uses the EUP approximate reciprocal.
    assert jnp.allclose(preds, ref, atol=2e-2, rtol=2e-2), (preds, ref)

    print("KERNEL_OK")
</pallas_src>

<mosaic_0001>
module attributes {stable_mosaic.version = 11 : i64} {
  func.func @kernel(%arg0: i32, %arg1: memref<8x128xbf16, #tpu.memory_space<vmem>>, %arg2: memref<16x128xbf16, #tpu.memory_space<vmem>>, %arg3: memref<32x16xbf16, #tpu.memory_space<vmem>>, %arg4: memref<32x1xf32, #tpu.memory_space<vmem>>, %arg5: memref<16x32xbf16, #tpu.memory_space<vmem>>, %arg6: memref<16x1xf32, #tpu.memory_space<vmem>>, %arg7: memref<8x16xbf16, #tpu.memory_space<vmem>>, %arg8: memref<8x1xf32, #tpu.memory_space<vmem>>, %arg9: memref<1x8xbf16, #tpu.memory_space<vmem>>, %arg10: memref<1x8xbf16, #tpu.memory_space<vmem>>, %arg11: memref<1x1xf32, #tpu.memory_space<vmem>>, %arg12: memref<1x128xf32, #tpu.memory_space<vmem>>) attributes {dimension_semantics = [#tpu.dimension_semantics<parallel>], iteration_bounds = array<i64: 3>, scalar_prefetch = 0 : i64, scratch_operands = 0 : i64, tpu.core_type = #tpu.core_type<tc>, window_params = [{transform_indices = @transform_0, window_bounds = array<i64: 8, 128>}, {transform_indices = @transform_1, window_bounds = array<i64: 16, 128>}, {pipeline_mode = #tpu.pipeline_mode<synchronous>, transform_indices = @transform_2, window_bounds = array<i64: 32, 16>}, {pipeline_mode = #tpu.pipeline_mode<synchronous>, transform_indices = @transform_3, window_bounds = array<i64: 32, 1>}, {pipeline_mode = #tpu.pipeline_mode<synchronous>, transform_indices = @transform_4, window_bounds = array<i64: 16, 32>}, {pipeline_mode = #tpu.pipeline_mode<synchronous>, transform_indices = @transform_5, window_bounds = array<i64: 16, 1>}, {pipeline_mode = #tpu.pipeline_mode<synchronous>, transform_indices = @transform_6, window_bounds = array<i64: 8, 16>}, {pipeline_mode = #tpu.pipeline_mode<synchronous>, transform_indices = @transform_7, window_bounds = array<i64: 8, 1>}, {pipeline_mode = #tpu.pipeline_mode<synchronous>, transform_indices = @transform_8, window_bounds = array<i64: 1, 8>}, {pipeline_mode = #tpu.pipeline_mode<synchronous>, transform_indices = @transform_9, window_bounds = array<i64: 1, 8>}, {pipeline_mode = #tpu.pipeline_mode<synchronous>, transform_indices = @transform_10, window_bounds = array<i64: 1, 1>}, {transform_indices = @transform_11, window_bounds = array<i64: 1, 128>}]} {
    %c0 = arith.constant 0 : index
    %c0_0 = arith.constant 0 : index
    %0 = vector.load %arg2[%c0, %c0_0] : memref<16x128xbf16, #tpu.memory_space<vmem>>, vector<16x128xbf16>
    %c0_1 = arith.constant 0 : index
    %c0_2 = arith.constant 0 : index
    %1 = vector.load %arg3[%c0_1, %c0_2] : memref<32x16xbf16, #tpu.memory_space<vmem>>, vector<32x16xbf16>
    %c0_3 = arith.constant 0 : index
    %c0_4 = arith.constant 0 : index
    %2 = vector.load %arg4[%c0_3, %c0_4] : memref<32x1xf32, #tpu.memory_space<vmem>>, vector<32x1xf32>
    %cst = arith.constant dense<0.000000e+00> : vector<32x128xf32>
    %3 = tpu.matmul %1, %0, %cst {dimension_numbers = #tpu.dot_dimension_numbers<[1], [0], [0], [1], [0, 0, 1, 1], [], []>} : vector<32x16xbf16>, vector<16x128xbf16>, vector<32x128xf32> -> vector<32x128xf32>
    %4 = vector.broadcast %2 : vector<32x1xf32> to vector<32x128xf32>
    %5 = arith.addf %3, %4 : vector<32x128xf32>
    %cst_5 = arith.constant 0.000000e+00 : f32
    %6 = vector.broadcast %cst_5 : f32 to vector<32x128xf32>
    %7 = arith.maximumf %5, %6 : vector<32x128xf32>
    %8 = arith.truncf %7 : vector<32x128xf32> to vector<32x128xbf16>
    %c0_6 = arith.constant 0 : index
    %c0_7 = arith.constant 0 : index
    %9 = vector.load %arg5[%c0_6, %c0_7] : memref<16x32xbf16, #tpu.memory_space<vmem>>, vector<16x32xbf16>
    %c0_8 = arith.constant 0 : index
    %c0_9 = arith.constant 0 : index
    %10 = vector.load %arg6[%c0_8, %c0_9] : memref<16x1xf32, #tpu.memory_space<vmem>>, vector<16x1xf32>
    %cst_10 = arith.constant dense<0.000000e+00> : vector<16x128xf32>
    %11 = tpu.matmul %9, %8, %cst_10 {dimension_numbers = #tpu.dot_dimension_numbers<[1], [0], [0], [1], [0, 0, 1, 1], [], []>} : vector<16x32xbf16>, vector<32x128xbf16>, vector<16x128xf32> -> vector<16x128xf32>
    %12 = vector.broadcast %10 : vector<16x1xf32> to vector<16x128xf32>
    %13 = arith.addf %11, %12 : vector<16x128xf32>
    %cst_11 = arith.constant 0.000000e+00 : f32
    %14 = vector.broadcast %cst_11 : f32 to vector<16x128xf32>
    %15 = arith.maximumf %13, %14 : vector<16x128xf32>
    %16 = arith.truncf %15 : vector<16x128xf32> to vector<16x128xbf16>
    %c0_12 = arith.constant 0 : index
    %c0_13 = arith.constant 0 : index
    %17 = vector.load %arg7[%c0_12, %c0_13] : memref<8x16xbf16, #tpu.memory_space<vmem>>, vector<8x16xbf16>
    %c0_14 = arith.constant 0 : index
    %c0_15 = arith.constant 0 : index
    %18 = vector.load %arg8[%c0_14, %c0_15] : memref<8x1xf32, #tpu.memory_space<vmem>>, vector<8x1xf32>
    %cst_16 = arith.constant dense<0.000000e+00> : vector<8x128xf32>
    %19 = tpu.matmul %17, %16, %cst_16 {dimension_numbers = #tpu.dot_dimension_numbers<[1], [0], [0], [1], [0, 0, 1, 1], [], []>} : vector<8x16xbf16>, vector<16x128xbf16>, vector<8x128xf32> -> vector<8x128xf32>
    %20 = vector.broadcast %18 : vector<8x1xf32> to vector<8x128xf32>
    %21 = arith.addf %19, %20 : vector<8x128xf32>
    %cst_17 = arith.constant 0.000000e+00 : f32
    %22 = vector.broadcast %cst_17 : f32 to vector<8x128xf32>
    %23 = arith.maximumf %21, %22 : vector<8x128xf32>
    %24 = arith.truncf %23 : vector<8x128xf32> to vector<8x128xbf16>
    %c0_18 = arith.constant 0 : index
    %c0_19 = arith.constant 0 : index
    %25 = vector.load %arg9[%c0_18, %c0_19] : memref<1x8xbf16, #tpu.memory_space<vmem>>, vector<1x8xbf16>
    %c0_20 = arith.constant 0 : index
    %c0_21 = arith.constant 0 : index
    %26 = vector.load %arg10[%c0_20, %c0_21] : memref<1x8xbf16, #tpu.memory_space<vmem>>, vector<1x8xbf16>
    %c0_22 = arith.constant 0 : index
    %c0_23 = arith.constant 0 : index
    %27 = vector.load %arg11[%c0_22, %c0_23] : memref<1x1xf32, #tpu.memory_space<vmem>>, vector<1x1xf32>
    %c0_24 = arith.constant 0 : index
    %c0_25 = arith.constant 0 : index
    %28 = vector.load %arg1[%c0_24, %c0_25] : memref<8x128xbf16, #tpu.memory_space<vmem>>, vector<8x128xbf16>
    %cst_26 = arith.constant dense<0.000000e+00> : vector<1x128xf32>
    %29 = tpu.matmul %25, %28, %cst_26 {dimension_numbers = #tpu.dot_dimension_numbers<[1], [0], [0], [1], [0, 0, 1, 1], [], []>} : vector<1x8xbf16>, vector<8x128xbf16>, vector<1x128xf32> -> vector<1x128xf32>
    %cst_27 = arith.constant dense<0.000000e+00> : vector<1x128xf32>
    %30 = tpu.matmul %26, %24, %cst_27 {dimension_numbers = #tpu.dot_dimension_numbers<[1], [0], [0], [1], [0, 0, 1, 1], [], []>} : vector<1x8xbf16>, vector<8x128xbf16>, vector<1x128xf32> -> vector<1x128xf32>
    %31 = arith.addf %29, %30 : vector<1x128xf32>
    %32 = vector.broadcast %27 : vector<1x1xf32> to vector<1x128xf32>
    %33 = arith.addf %31, %32 : vector<1x128xf32>
    %cst_28 = arith.constant 0.000000e+00 : f32
    %34 = vector.broadcast %cst_28 : f32 to vector<1x128xf32>
    %35 = arith.subf %34, %33 : vector<1x128xf32>
    %36 = math.exp %35 : vector<1x128xf32>
    %cst_29 = arith.constant 1.000000e+00 : f32
    %37 = vector.broadcast %cst_29 : f32 to vector<1x128xf32>
    %38 = arith.addf %37, %36 : vector<1x128xf32>
    %39 = tpu.reciprocal %38 {approx = true} : vector<1x128xf32> -> vector<1x128xf32>
    %c0_30 = arith.constant 0 : index
    %c0_31 = arith.constant 0 : index
    %40 = vector.load %arg12[%c0_30, %c0_31] : memref<1x128xf32, #tpu.memory_space<vmem>>, vector<1x128xf32>
    tpu.vector_store %arg12[%c0_30, %c0_31], %39 {strides = array<i32>} : memref<1x128xf32, #tpu.memory_space<vmem>>, vector<1x128xf32>,
    return
  }
  func.func @transform_0(%arg0: i32) -> (i32, i32) {
    %c0_i32 = arith.constant 0 : i32
    %c0_i32_0 = arith.constant 0 : i32
    return %c0_i32, %arg0 : i32, i32
  }
  func.func @transform_1(%arg0: i32) -> (i32, i32) {
    %c0_i32 = arith.constant 0 : i32
    %c0_i32_0 = arith.constant 0 : i32
    return %c0_i32, %arg0 : i32, i32
  }
  func.func @transform_2(%arg0: i32) -> (i32, i32) {
    %c0_i32 = arith.constant 0 : i32
    %c0_i32_0 = arith.constant 0 : i32
    %c0_i32_1 = arith.constant 0 : i32
    return %c0_i32, %c0_i32_0 : i32, i32
  }
  func.func @transform_3(%arg0: i32) -> (i32, i32) {
    %c0_i32 = arith.constant 0 : i32
    %c0_i32_0 = arith.constant 0 : i32
    %c0_i32_1 = arith.constant 0 : i32
    return %c0_i32, %c0_i32_0 : i32, i32
  }
  func.func @transform_4(%arg0: i32) -> (i32, i32) {
    %c0_i32 = arith.constant 0 : i32
    %c0_i32_0 = arith.constant 0 : i32
    %c0_i32_1 = arith.constant 0 : i32
    return %c0_i32, %c0_i32_0 : i32, i32
  }
  func.func @transform_5(%arg0: i32) -> (i32, i32) {
    %c0_i32 = arith.constant 0 : i32
    %c0_i32_0 = arith.constant 0 : i32
    %c0_i32_1 = arith.constant 0 : i32
    return %c0_i32, %c0_i32_0 : i32, i32
  }
  func.func @transform_6(%arg0: i32) -> (i32, i32) {
    %c0_i32 = arith.constant 0 : i32
    %c0_i32_0 = arith.constant 0 : i32
    %c0_i32_1 = arith.constant 0 : i32
    return %c0_i32, %c0_i32_0 : i32, i32
  }
  func.func @transform_7(%arg0: i32) -> (i32, i32) {
    %c0_i32 = arith.constant 0 : i32
    %c0_i32_0 = arith.constant 0 : i32
    %c0_i32_1 = arith.constant 0 : i32
    return %c0_i32, %c0_i32_0 : i32, i32
  }
  func.func @transform_8(%arg0: i32) -> (i32, i32) {
    %c0_i32 = arith.constant 0 : i32
    %c0_i32_0 = arith.constant 0 : i32
    %c0_i32_1 = arith.constant 0 : i32
    return %c0_i32, %c0_i32_0 : i32, i32
  }
  func.func @transform_9(%arg0: i32) -> (i32, i32) {
    %c0_i32 = arith.constant 0 : i32
    %c0_i32_0 = arith.constant 0 : i32
    %c0_i32_1 = arith.constant 0 : i32
    return %c0_i32, %c0_i32_0 : i32, i32
  }
  func.func @transform_10(%arg0: i32) -> (i32, i32) {
    %c0_i32 = arith.constant 0 : i32
    %c0_i32_0 = arith.constant 0 : i32
    %c0_i32_1 = arith.constant 0 : i32
    return %c0_i32, %c0_i32_0 : i32, i32
  }
  func.func @transform_11(%arg0: i32) -> (i32, i32) {
    %c0_i32 = arith.constant 0 : i32
    %c0_i32_0 = arith.constant 0 : i32
    return %c0_i32, %arg0 : i32, i32
  }
}

</mosaic_0001>

<llo_original>
// kernel: tpu_custom_call.1
$region0: #{tpu_custom_call.1}
  #allocation0 [shape = 'u32[]', space=smem, size = 0x4, offset = 0x4, fixed_abs, tag = 'smem constant byte address 0x4 - core index']
  #allocation1 [shape = 'u32[144,128]{1,0:T(1,128)}', space=vmem, size = 0x12000, scoped, tag = 'internal scratch']
  #allocation2 [shape = 'f32[1,1]{1,0:T(1,128)S(1)}', space=vmem, size = 0x200, scoped, tag = 'scoped memory for tpu_custom_call.1']
  %s0 = inlined_call_operand.vmem [shape: bf16[8,384], index: 0, kind: input, shape index: {}]
  %s1 = inlined_call_operand.vmem [shape: bf16[16,384], index: 1, kind: input, shape index: {}]
  %s2 = inlined_call_operand.vmem [shape: bf16[32,16], index: 2, kind: input, shape index: {}]
  %s3 = inlined_call_operand.vmem [shape: f32[32,1], index: 3, kind: input, shape index: {}]
  %s4 = inlined_call_operand.vmem [shape: bf16[16,32], index: 4, kind: input, shape index: {}]
  %s5 = inlined_call_operand.vmem [shape: f32[16,1], index: 5, kind: input, shape index: {}]
  %s6 = inlined_call_operand.vmem [shape: bf16[8,16], index: 6, kind: input, shape index: {}]
  %s7 = inlined_call_operand.vmem [shape: f32[8,1], index: 7, kind: input, shape index: {}]
  %s8 = inlined_call_operand.vmem [shape: bf16[1,8], index: 8, kind: input, shape index: {}]
  %s9 = inlined_call_operand.vmem [shape: bf16[1,8], index: 9, kind: input, shape index: {}]
  %s10 = inlined_call_operand.<no memory space> [shape: f32[1,1], index: 10, kind: input, shape index: {}]
  %s11 = inlined_call_operand.hbm [shape: f32[1,384], index: 11, kind: output, shape index: {}]
  %s12 = sld [smem:[#allocation0]]
  $region118: #{tpu_custom_call.1} parent=0
    _
  %s14 = ssub.s32 1, %s12
  %s15 = scalar_select 0, %s14, %s12
  %v16 = vstv %s10
  %17 = vst [vmem:[#allocation2] sm:$0x1] %v16
  $region1: #{tpu_custom_call.1} parent=0
    #allocation3 [shape = 'u8[8192]{0}', space=vmem, size = 0x2000, scoped, tag = 'input window, operand 1']
    #allocation4 [shape = 'u8[1024]{0}', space=vmem, size = 0x400, scoped, tag = 'output window, operand 0']
    #allocation5 [shape = 's32[2]{0}', space=sflag, size = 0x8, scoped, tag = 'scoped memory for tpu_custom_call.1']
    %18 = vsyncpa [#allocation5], 0
    %s19 = scalar_lea.sflag [#allocation5], 1
    %20 = vsyncpa %s19, 0
    loop: start=0, step=1, limit=5
    $region2: #{tpu_custom_call.1} parent=1 // loop_pre_header
      _
    $region3: #{tpu_custom_call.1} parent=1 // loop_header
      %s22 = sphi 0, %s26
      %p23 = scmp.ge.s32.totalorder %s22, 5
      %s32 = sphi 0, %s34
      %s35 = sphi 0, %s32
      %s36 = sphi 0, %s35
      %s52 = sphi 0, %s36
      %s58 = sphi 0, %s60
      %s61 = sphi 0, %s58
      %s62 = sphi 0, %s61
      %s78 = sphi 0, %s62
      %s82 = sphi 0, %s82
      %s84 = sphi 0, %s82
      %s85 = sphi 0, %s84
      %s99 = sphi 0, %s85
      %s103 = sphi 0, %s103
      %s105 = sphi 0, %s103
      %s106 = sphi 0, %s105
      %s120 = sphi 0, %s106
      %s124 = sphi 0, %s124
      %s126 = sphi 0, %s124
      %s127 = sphi 0, %s126
      %s141 = sphi 0, %s127
      %s145 = sphi 0, %s145
      %s147 = sphi 0, %s145
      %s148 = sphi 0, %s147
      %s162 = sphi 0, %s148
      %s166 = sphi 0, %s166
      %s168 = sphi 0, %s166
      %s169 = sphi 0, %s168
      %s183 = sphi 0, %s169
      %s187 = sphi 0, %s187
      %s189 = sphi 0, %s187
      %s190 = sphi 0, %s189
      %s204 = sphi 0, %s190
      %s208 = sphi 0, %s208
      %s210 = sphi 0, %s208
      %s211 = sphi 0, %s210
      %s225 = sphi 0, %s211
      %s229 = sphi 0, %s229
      %s231 = sphi 0, %s229
      %s232 = sphi 0, %s231
      %s246 = sphi 0, %s232
      %s250 = sphi 0, %s250
      %s252 = sphi 0, %s250
      %s253 = sphi 0, %s252
      %s267 = sphi 0, %s253
      %s273 = sphi 0, %s275
      %s276 = sphi 0, %s273
      %s277 = sphi 0, %s276
      %s293 = sphi 0, %s277
    $region4: #{tpu_custom_call.1} parent=1 // loop_header_branch
      %25 = sbr.rel (%p23) target = $region8
    $region5: #{tpu_custom_call.1} parent=1 // loop_body
      %s27 = ssub.s32 %s22, 1
      %s28 = ssub.s32 %s22, 2
      %s29 = sadd.s32 %s22, 1
      %s30 = ssub.s32 %s22, %s29
      %p31 = scmp.eq.s32.totalorder %s30, 0
      %s33 = sadd.s32 %s32, 1
      %s34 = scalar_select %p31, %s32, %s33
      %p37 = pneg %p31
      %p38 = scmp.eq.s32.totalorder %s22, 2
      %p39 = por %p37, %p38
      %p40 = scmp.ne.s32.totalorder %s32, %s35
      %p41 = scmp.eq.s32.totalorder %s22, 0
      %p42 = por %p40, %p41
      %p43 = scmp.ne.s32.totalorder %s32, %s35
      %p44 = scmp.eq.s32.totalorder %s27, 2
      %p45 = por %p43, %p44
      %p46 = scmp.ne.s32.totalorder %s35, %s36
      %p47 = scmp.eq.s32.totalorder %s27, 0
      %p48 = por %p46, %p47
      %p49 = scmp.ne.s32.totalorder %s35, %s36
      %p50 = scmp.eq.s32.totalorder %s28, 2
      %p51 = por %p49, %p50
      %p53 = scmp.ne.s32.totalorder %s36, %s52
      %p54 = scmp.eq.s32.totalorder %s28, 0
      %p55 = por %p53, %p54
      %s56 = ssub.s32 %s22, %s29
      %p57 = scmp.eq.s32.totalorder %s56, 0
      %s59 = sadd.s32 %s58, 1
      %s60 = scalar_select %p57, %s58, %s59
      %p63 = pneg %p57
      %p64 = scmp.eq.s32.totalorder %s22, 2
      %p65 = por %p63, %p64
      %p66 = scmp.ne.s32.totalorder %s58, %s61
      %p67 = scmp.eq.s32.totalorder %s22, 0
      %p68 = por %p66, %p67
      %p69 = scmp.ne.s32.totalorder %s58, %s61
      %p70 = scmp.eq.s32.totalorder %s27, 2
      %p71 = por %p69, %p70
      %p72 = scmp.ne.s32.totalorder %s61, %s62
      %p73 = scmp.eq.s32.totalorder %s27, 0
      %p74 = por %p72, %p73
      %p75 = scmp.ne.s32.totalorder %s61, %s62
      %p76 = scmp.eq.s32.totalorder %s28, 2
      %p77 = por %p75, %p76
      %p79 = scmp.ne.s32.totalorder %s62, %s78
      %p80 = scmp.eq.s32.totalorder %s28, 0
      %p81 = por %p79, %p80
      %s83 = sadd.s32 %s82, 1
      %p86 = scmp.eq.s32.totalorder %s22, 2
      %p87 = scmp.ne.s32.totalorder %s82, %s84
      %p88 = scmp.eq.s32.totalorder %s22, 0
      %p89 = por %p87, %p88
      %p90 = scmp.ne.s32.totalorder %s82, %s84
      %p91 = scmp.eq.s32.totalorder %s27, 2
      %p92 = por %p90, %p91
      %p93 = scmp.ne.s32.totalorder %s84, %s85
      %p94 = scmp.eq.s32.totalorder %s27, 0
      %p95 = por %p93, %p94
      %p96 = scmp.ne.s32.totalorder %s84, %s85
      %p97 = scmp.eq.s32.totalorder %s28, 2
      %p98 = por %p96, %p97
      %p100 = scmp.ne.s32.totalorder %s85, %s99
      %p101 = scmp.eq.s32.totalorder %s28, 0
      %p102 = por %p100, %p101
      %s104 = sadd.s32 %s103, 1
      %p107 = scmp.eq.s32.totalorder %s22, 2
      %p108 = scmp.ne.s32.totalorder %s103, %s105
      %p109 = scmp.eq.s32.totalorder %s22, 0
      %p110 = por %p108, %p109
      %p111 = scmp.ne.s32.totalorder %s103, %s105
      %p112 = scmp.eq.s32.totalorder %s27, 2
      %p113 = por %p111, %p112
      %p114 = scmp.ne.s32.totalorder %s105, %s106
      %p115 = scmp.eq.s32.totalorder %s27, 0
      %p116 = por %p114, %p115
      %p117 = scmp.ne.s32.totalorder %s105, %s106
      %p118 = scmp.eq.s32.totalorder %s28, 2
      %p119 = por %p117, %p118
      %p121 = scmp.ne.s32.totalorder %s106, %s120
      %p122 = scmp.eq.s32.totalorder %s28, 0
      %p123 = por %p121, %p122
      %s125 = sadd.s32 %s124, 1
      %p128 = scmp.eq.s32.totalorder %s22, 2
      %p129 = scmp.ne.s32.totalorder %s124, %s126
      %p130 = scmp.eq.s32.totalorder %s22, 0
      %p131 = por %p129, %p130
      %p132 = scmp.ne.s32.totalorder %s124, %s126
      %p133 = scmp.eq.s32.totalorder %s27, 2
      %p134 = por %p132, %p133
      %p135 = scmp.ne.s32.totalorder %s126, %s127
      %p136 = scmp.eq.s32.totalorder %s27, 0
      %p137 = por %p135, %p136
      %p138 = scmp.ne.s32.totalorder %s126, %s127
      %p139 = scmp.eq.s32.totalorder %s28, 2
      %p140 = por %p138, %p139
      %p142 = scmp.ne.s32.totalorder %s127, %s141
      %p143 = scmp.eq.s32.totalorder %s28, 0
      %p144 = por %p142, %p143
      %s146 = sadd.s32 %s145, 1
      %p149 = scmp.eq.s32.totalorder %s22, 2
      %p150 = scmp.ne.s32.totalorder %s145, %s147
      %p151 = scmp.eq.s32.totalorder %s22, 0
      %p152 = por %p150, %p151
      %p153 = scmp.ne.s32.totalorder %s145, %s147
      %p154 = scmp.eq.s32.totalorder %s27, 2
      %p155 = por %p153, %p154
      %p156 = scmp.ne.s32.totalorder %s147, %s148
      %p157 = scmp.eq.s32.totalorder %s27, 0
      %p158 = por %p156, %p157
      %p159 = scmp.ne.s32.totalorder %s147, %s148
      %p160 = scmp.eq.s32.totalorder %s28, 2
      %p161 = por %p159, %p160
      %p163 = scmp.ne.s32.totalorder %s148, %s162
      %p164 = scmp.eq.s32.totalorder %s28, 0
      %p165 = por %p163, %p164
      %s167 = sadd.s32 %s166, 1
      %p170 = scmp.eq.s32.totalorder %s22, 2
      %p171 = scmp.ne.s32.totalorder %s166, %s168
      %p172 = scmp.eq.s32.totalorder %s22, 0
      %p173 = por %p171, %p172
      %p174 = scmp.ne.s32.totalorder %s166, %s168
      %p175 = scmp.eq.s32.totalorder %s27, 2
      %p176 = por %p174, %p175
      %p177 = scmp.ne.s32.totalorder %s168, %s169
      %p178 = scmp.eq.s32.totalorder %s27, 0
      %p179 = por %p177, %p178
      %p180 = scmp.ne.s32.totalorder %s168, %s169
      %p181 = scmp.eq.s32.totalorder %s28, 2
      %p182 = por %p180, %p181
      %p184 = scmp.ne.s32.totalorder %s169, %s183
      %p185 = scmp.eq.s32.totalorder %s28, 0
      %p186 = por %p184, %p185
      %s188 = sadd.s32 %s187, 1
      %p191 = scmp.eq.s32.totalorder %s22, 2
      %p192 = scmp.ne.s32.totalorder %s187, %s189
      %p193 = scmp.eq.s32.totalorder %s22, 0
      %p194 = por %p192, %p193
      %p195 = scmp.ne.s32.totalorder %s187, %s189
      %p196 = scmp.eq.s32.totalorder %s27, 2
      %p197 = por %p195, %p196
      %p198 = scmp.ne.s32.totalorder %s189, %s190
      %p199 = scmp.eq.s32.totalorder %s27, 0
      %p200 = por %p198, %p199
      %p201 = scmp.ne.s32.totalorder %s189, %s190
      %p202 = scmp.eq.s32.totalorder %s28, 2
      %p203 = por %p201, %p202
      %p205 = scmp.ne.s32.totalorder %s190, %s204
      %p206 = scmp.eq.s32.totalorder %s28, 0
      %p207 = por %p205, %p206
      %s209 = sadd.s32 %s208, 1
      %p212 = scmp.eq.s32.totalorder %s22, 2
      %p213 = scmp.ne.s32.totalorder %s208, %s210
      %p214 = scmp.eq.s32.totalorder %s22, 0
      %p215 = por %p213, %p214
      %p216 = scmp.ne.s32.totalorder %s208, %s210
      %p217 = scmp.eq.s32.totalorder %s27, 2
      %p218 = por %p216, %p217
      %p219 = scmp.ne.s32.totalorder %s210, %s211
      %p220 = scmp.eq.s32.totalorder %s27, 0
      %p221 = por %p219, %p220
      %p222 = scmp.ne.s32.totalorder %s210, %s211
      %p223 = scmp.eq.s32.totalorder %s28, 2
      %p224 = por %p222, %p223
      %p226 = scmp.ne.s32.totalorder %s211, %s225
      %p227 = scmp.eq.s32.totalorder %s28, 0
      %p228 = por %p226, %p227
      %s230 = sadd.s32 %s229, 1
      %p233 = scmp.eq.s32.totalorder %s22, 2
      %p234 = scmp.ne.s32.totalorder %s229, %s231
      %p235 = scmp.eq.s32.totalorder %s22, 0
      %p236 = por %p234, %p235
      %p237 = scmp.ne.s32.totalorder %s229, %s231
      %p238 = scmp.eq.s32.totalorder %s27, 2
      %p239 = por %p237, %p238
      %p240 = scmp.ne.s32.totalorder %s231, %s232
      %p241 = scmp.eq.s32.totalorder %s27, 0
      %p242 = por %p240, %p241
      %p243 = scmp.ne.s32.totalorder %s231, %s232
      %p244 = scmp.eq.s32.totalorder %s28, 2
      %p245 = por %p243, %p244
      %p247 = scmp.ne.s32.totalorder %s232, %s246
      %p248 = scmp.eq.s32.totalorder %s28, 0
      %p249 = por %p247, %p248
      %s251 = sadd.s32 %s250, 1
      %p254 = scmp.eq.s32.totalorder %s22, 2
      %p255 = scmp.ne.s32.totalorder %s250, %s252
      %p256 = scmp.eq.s32.totalorder %s22, 0
      %p257 = por %p255, %p256
      %p258 = scmp.ne.s32.totalorder %s250, %s252
      %p259 = scmp.eq.s32.totalorder %s27, 2
      %p260 = por %p258, %p259
      %p261 = scmp.ne.s32.totalorder %s252, %s253
      %p262 = scmp.eq.s32.totalorder %s27, 0
      %p263 = por %p261, %p262
      %p264 = scmp.ne.s32.totalorder %s252, %s253
      %p265 = scmp.eq.s32.totalorder %s28, 2
      %p266 = por %p264, %p265
      %p268 = scmp.ne.s32.totalorder %s253, %s267
      %p269 = scmp.eq.s32.totalorder %s28, 0
      %p270 = por %p268, %p269
      %s271 = ssub.s32 %s22, %s29
      %p272 = scmp.eq.s32.totalorder %s271, 0
      %s274 = sadd.s32 %s273, 1
      %s275 = scalar_select %p272, %s273, %s274
      %p278 = pneg %p272
      %p279 = scmp.eq.s32.totalorder %s22, 2
      %p280 = por %p278, %p279
      %p281 = scmp.ne.s32.totalorder %s273, %s276
      %p282 = scmp.eq.s32.totalorder %s22, 0
      %p283 = por %p281, %p282
      %p284 = scmp.ne.s32.totalorder %s273, %s276
      %p285 = scmp.eq.s32.totalorder %s27, 2
      %p286 = por %p284, %p285
      %p287 = scmp.ne.s32.totalorder %s276, %s277
      %p288 = scmp.eq.s32.totalorder %s27, 0
      %p289 = por %p287, %p288
      %p290 = scmp.ne.s32.totalorder %s276, %s277
      %p291 = scmp.eq.s32.totalorder %s28, 2
      %p292 = por %p290, %p291
      %p294 = scmp.ne.s32.totalorder %s277, %s293
      %p295 = scmp.eq.s32.totalorder %s28, 0
      %p296 = por %p294, %p295
      %p297 = scmp.le.s32.totalorder 1, %s22
      %p298 = scmp.lt.s32.totalorder %s22, 4
      %p299 = pnand %p297, %p298
      %p300 = pneg %p299
      // Predicated region
      $region9: #{tpu_custom_call.1} parent=5 // pred_check
        _
      $region10: #{tpu_custom_call.1} parent=5 // pred_check_branch
        %302 = sbr.rel (%p299) target = $region12
      $region11: #{tpu_custom_call.1} parent=5 // pred_region
        %s303 = ssub.s32 %s22, 1
        // Predicated region
        $region13: #{tpu_custom_call.1} parent=11 // pred_check
          %p304 = pneg %p95
        $region14: #{tpu_custom_call.1} parent=11 // pred_check_branch
          %306 = sbr.rel (%p304) target = $region16
        $region15: #{tpu_custom_call.1} parent=11 // pred_region
          _
        $region16: #{tpu_custom_call.1} parent=11 // pred_fallthru
          _
        // Predicated region
        $region17: #{tpu_custom_call.1} parent=11 // pred_check
          %p307 = pneg %p116
        $region18: #{tpu_custom_call.1} parent=11 // pred_check_branch
          %309 = sbr.rel (%p307) target = $region20
        $region19: #{tpu_custom_call.1} parent=11 // pred_region
          _
        $region20: #{tpu_custom_call.1} parent=11 // pred_fallthru
          _
        // Predicated region
        $region21: #{tpu_custom_call.1} parent=11 // pred_check
          %p310 = pneg %p137
        $region22: #{tpu_custom_call.1} parent=11 // pred_check_branch
          %312 = sbr.rel (%p310) target = $region24
        $region23: #{tpu_custom_call.1} parent=11 // pred_region
          _
        $region24: #{tpu_custom_call.1} parent=11 // pred_fallthru
          _
        // Predicated region
        $region25: #{tpu_custom_call.1} parent=11 // pred_check
          %p313 = pneg %p158
        $region26: #{tpu_custom_call.1} parent=11 // pred_check_branch
          %315 = sbr.rel (%p313) target = $region28
        $region27: #{tpu_custom_call.1} parent=11 // pred_region
          _
        $region28: #{tpu_custom_call.1} parent=11 // pred_fallthru
          _
        // Predicated region
        $region29: #{tpu_custom_call.1} parent=11 // pred_check
          %p316 = pneg %p179
        $region30: #{tpu_custom_call.1} parent=11 // pred_check_branch
          %318 = sbr.rel (%p316) target = $region32
        $region31: #{tpu_custom_call.1} parent=11 // pred_region
          _
        $region32: #{tpu_custom_call.1} parent=11 // pred_fallthru
          _
        // Predicated region
        $region33: #{tpu_custom_call.1} parent=11 // pred_check
          %p319 = pneg %p200
        $region34: #{tpu_custom_call.1} parent=11 // pred_check_branch
          %321 = sbr.rel (%p319) target = $region36
        $region35: #{tpu_custom_call.1} parent=11 // pred_region
          _
        $region36: #{tpu_custom_call.1} parent=11 // pred_fallthru
          _
        // Predicated region
        $region37: #{tpu_custom_call.1} parent=11 // pred_check
          %p322 = pneg %p221
        $region38: #{tpu_custom_call.1} parent=11 // pred_check_branch
          %324 = sbr.rel (%p322) target = $region40
        $region39: #{tpu_custom_call.1} parent=11 // pred_region
          _
        $region40: #{tpu_custom_call.1} parent=11 // pred_fallthru
          _
        // Predicated region
        $region41: #{tpu_custom_call.1} parent=11 // pred_check
          %p325 = pneg %p242
        $region42: #{tpu_custom_call.1} parent=11 // pred_check_branch
          %327 = sbr.rel (%p325) target = $region44
        $region43: #{tpu_custom_call.1} parent=11 // pred_region
          _
        $region44: #{tpu_custom_call.1} parent=11 // pred_fallthru
          _
        // Predicated region
        $region45: #{tpu_custom_call.1} parent=11 // pred_check
          %p328 = pneg %p263
        $region46: #{tpu_custom_call.1} parent=11 // pred_check_branch
          %330 = sbr.rel (%p328) target = $region48
        $region47: #{tpu_custom_call.1} parent=11 // pred_region
          _
        $region48: #{tpu_custom_call.1} parent=11 // pred_fallthru
          _
      $region12: #{tpu_custom_call.1} parent=5 // pred_fallthru
        _
      %p331 = scmp.lt.s32.totalorder %s22, 3
      // Predicated region
      $region49: #{tpu_custom_call.1} parent=5 // pred_check
        %p332 = pneg %p331
      $region50: #{tpu_custom_call.1} parent=5 // pred_check_branch
        %334 = sbr.rel (%p332) target = $region52
      $region51: #{tpu_custom_call.1} parent=5 // pred_region
        // Predicated region
        $region53: #{tpu_custom_call.1} parent=51 // pred_check
          %p335 = pneg %p42
        $region54: #{tpu_custom_call.1} parent=51 // pred_check_branch
          %337 = sbr.rel (%p335) target = $region56
        $region55: #{tpu_custom_call.1} parent=51 // pred_region
          %p338 = scmp.lt.s32.totalorder %s22, 2
          %s339 = scalar_select %p338, %s22, 2
          %s340 = smul.addr %s339, 4
          %s341 = scalar_lea.vmem %s0, %s340
        $region56: #{tpu_custom_call.1} parent=51 // pred_fallthru
          _
        // Predicated region
        $region57: #{tpu_custom_call.1} parent=51 // pred_check
          %p342 = pneg %p68
        $region58: #{tpu_custom_call.1} parent=51 // pred_check_branch
          %344 = sbr.rel (%p342) target = $region60
        $region59: #{tpu_custom_call.1} parent=51 // pred_region
          %s345 = sand.u32 %s58, 1
          %s346 = sand.u32 %s58, 1
          %s347 = smul.addr %s346, 8
          %s348 = scalar_lea.vmem [#allocation3], %s347
          %s349 = smul.addr %s22, 4
          %s350 = scalar_lea.vmem %s1, %s349
          // Predicated region
          $region61: #{tpu_custom_call.1} parent=59 // pred_check
            _
          $region62: #{tpu_custom_call.1} parent=59 // pred_check_branch
            %352 = sbr.rel (0) target = $region64
          $region63: #{tpu_custom_call.1} parent=59 // pred_region
            // Predicated region
            $region65: #{tpu_custom_call.1} parent=63 // pred_check
              _
            $region66: #{tpu_custom_call.1} parent=63 // pred_check_branch
              %354 = sbr.rel target = $region68
            $region67: #{tpu_custom_call.1} parent=63 // pred_region
              // Predicated region
              $region80: #{tpu_custom_call.1} parent=67 // pred_check
                _
              $region81: #{tpu_custom_call.1} parent=67 // pred_check_branch
                %371 = sbr.rel (0) target = $region83
              $region82: #{tpu_custom_call.1} parent=67 // pred_region
                loop: start=0, step=1, limit=1
                $region84: #{tpu_custom_call.1} parent=82 // loop_pre_header
                  _
                $region85: #{tpu_custom_call.1} parent=82 // loop_header
                  %s373 = sphi 0, %s377
                  %p374 = scmp.ge.s32.totalorder %s373, 1
                  %s378 = sphi %s350, %s350
                  %s379 = sphi %s348, %s348
                $region86: #{tpu_custom_call.1} parent=82 // loop_header_branch
                  %376 = sbr.rel (%p374) target = $region90
                $region87: #{tpu_custom_call.1} parent=82 // loop_body
                  _
                $region88: #{tpu_custom_call.1} parent=82 // loop_footer
                  %s377 = sadd.s32 1, %s373
                $region89: #{tpu_custom_call.1} parent=82 // loop_footer_branch
                  %372 = sbr.rel target = $region85
                $region90: #{tpu_custom_call.1} parent=82 // loop_exit
                  _
                loop: start=0, step=1, limit=1
                $region91: #{tpu_custom_call.1} parent=82 // loop_pre_header
                  _
                $region92: #{tpu_custom_call.1} parent=82 // loop_header
                  %s382 = sphi 0, %s386
                  %p383 = scmp.ge.s32.totalorder %s382, 1
                  %s387 = sphi %s350, %s350
                  %s388 = sphi %s348, %s348
                $region93: #{tpu_custom_call.1} parent=82 // loop_header_branch
                  %385 = sbr.rel (%p383) target = $region97
                $region94: #{tpu_custom_call.1} parent=82 // loop_body
                  %v389 = vld [vmem:[%s387] sm:$0xf]
                  %390 = vst [vmem:[%s388] sm:$0xf] %v389
                  %v391 = vld [vmem:[%s387 + $0xc] sm:$0xf]
                  %392 = vst [vmem:[%s388 + $0x4] sm:$0xf] %v391
                $region95: #{tpu_custom_call.1} parent=82 // loop_footer
                  %s386 = sadd.s32 1, %s382
                $region96: #{tpu_custom_call.1} parent=82 // loop_footer_branch
                  %381 = sbr.rel target = $region92
                $region97: #{tpu_custom_call.1} parent=82 // loop_exit
                  _
              $region83: #{tpu_custom_call.1} parent=67 // pred_fallthru
                _
            $region68: #{tpu_custom_call.1} parent=63 // pred_fallthru
              _
            // Predicated region
            $region69: #{tpu_custom_call.1} parent=63 // pred_check
              _
            $region70: #{tpu_custom_call.1} parent=63 // pred_check_branch
              %356 = sbr.rel (0) target = $region72
            $region71: #{tpu_custom_call.1} parent=63 // pred_region
              loop: start=0, step=1, limit=1
              $region73: #{tpu_custom_call.1} parent=71 // loop_pre_header
                _
              $region74: #{tpu_custom_call.1} parent=71 // loop_header
                %s359 = sphi 0, %s363
                %p360 = scmp.ge.s32.totalorder %s359, 1
                %s364 = sphi %s350, %s350
                %s365 = sphi %s348, %s348
              $region75: #{tpu_custom_call.1} parent=71 // loop_header_branch
                %362 = sbr.rel (%p360) target = $region79
              $region76: #{tpu_custom_call.1} parent=71 // loop_body
                %v366 = vld [vmem:[%s364] sm:$0xf]
                %367 = vst [vmem:[%s365] sm:$0xf] %v366
                %v368 = vld [vmem:[%s364 + $0xc] sm:$0xf]
                %369 = vst [vmem:[%s365 + $0x4] sm:$0xf] %v368
              $region77: #{tpu_custom_call.1} parent=71 // loop_footer
                %s363 = sadd.s32 1, %s359
              $region78: #{tpu_custom_call.1} parent=71 // loop_footer_branch
                %358 = sbr.rel target = $region74
              $region79: #{tpu_custom_call.1} parent=71 // loop_exit
                _
            $region72: #{tpu_custom_call.1} parent=63 // pred_fallthru
              _
          $region64: #{tpu_custom_call.1} parent=59 // pred_fallthru
            _
          %393 = vnop
        $region60: #{tpu_custom_call.1} parent=51 // pred_fallthru
          _
      $region52: #{tpu_custom_call.1} parent=5 // pred_fallthru
        _
      %p394 = scmp.le.s32.totalorder 1, %s22
      %p395 = scmp.lt.s32.totalorder %s22, 4
      %p396 = pnand %p394, %p395
      %p397 = pneg %p396
      // Predicated region
      $region98: #{tpu_custom_call.1} parent=5 // pred_check
        _
      $region99: #{tpu_custom_call.1} parent=5 // pred_check_branch
        %399 = sbr.rel (%p396) target = $region101
      $region100: #{tpu_custom_call.1} parent=5 // pred_region
        %s400 = ssub.s32 %s22, 1
        %s401 = sand.u32 %s61, 1
        %s402 = sand.u32 %s61, 1
        %s403 = smul.addr %s402, 8
        %s404 = scalar_lea.vmem [#allocation3], %s403
        // Predicated region
        $region102: #{tpu_custom_call.1} parent=100 // pred_check
          %p405 = pneg %p74
        $region103: #{tpu_custom_call.1} parent=100 // pred_check_branch
          %407 = sbr.rel (%p405) target = $region105
        $region104: #{tpu_custom_call.1} parent=100 // pred_region
          _
        $region105: #{tpu_custom_call.1} parent=100 // pred_fallthru
          _
        %p408 = scmp.lt.s32.totalorder %s27, 2
        %s409 = scalar_select %p408, %s27, 2
        %s410 = smul.addr %s409, 4
        %s411 = scalar_lea.vmem %s0, %s410
        %p412 = pneg %p48
        %p413 = pneg %p45
        %s414 = sand.u32 %s61, 1
        %s415 = sand.u32 %s61, 1
        %s416 = smul.addr %s415, 8
        %s417 = scalar_lea.vmem [#allocation3], %s416
        %p418 = pneg %p74
        %p419 = pneg %p71
        %p420 = pneg %p95
        %p421 = pneg %p92
        %p422 = pneg %p116
        %p423 = pneg %p113
        %p424 = pneg %p137
        %p425 = pneg %p134
        %p426 = pneg %p158
        %p427 = pneg %p155
        %p428 = pneg %p179
        %p429 = pneg %p176
        %p430 = pneg %p200
        %p431 = pneg %p197
        %p432 = pneg %p221
        %p433 = pneg %p218
        %p434 = pneg %p242
        %p435 = pneg %p239
        %p436 = pneg %p263
        %p437 = pneg %p260
        %p438 = pneg %p289
        %p439 = pneg %p286
        %s440 = sand.u32 %s276, 1
        %s441 = scalar_lea.sflag [#allocation5], %s440
        %s442 = sand.u32 %s276, 1
        %s443 = scalar_lea.vmem [#allocation4], %s442
        %p444 = scmp.lt.s32.totalorder %s27, 2
        %s445 = scalar_select %p444, %s27, 2
        %s446 = smul.addr %s445, 4
        %s447 = scalar_lea.vmem %s0, %s446
        %v449 = vld [vmem:[%s404] sm:$0xf]
        %v450 = vld [vmem:[%s404 + $0x4] sm:$0xf]
        %v451 = vld [vmem:[%s2] sm:$0xf]
        %v452 = vld [vmem:[%s2 + $0x4] sm:$0xf]
        %v453 = vld [vmem:[%s2 + $0x8] sm:$0xf]
        %v454 = vld [vmem:[%s2 + $0xc] sm:$0xf]
        %v455 = vld [vmem:[%s3] sm:$0xff]
        %v456 = vld [vmem:[%s3 + $0x8] sm:$0xff]
        %v457 = vld [vmem:[%s3 + $0x10] sm:$0xff]
        %v458 = vld [vmem:[%s3 + $0x18] sm:$0xff]
        %460 = vset.pattern.permute.xlu0 0
        %461 = vperm.xlu0 %460, %v455
        %v462 = vpop.permute.xlu0 %461
        %465 = vset.pattern.permute.xlu0 0
        %466 = vperm.xlu0 %465, %v456
        %v467 = vpop.permute.xlu0 %466
        %470 = vset.pattern.permute.xlu0 0
        %471 = vperm.xlu0 %470, %v457
        %v472 = vpop.permute.xlu0 %471
        %475 = vset.pattern.permute.xlu0 0
        %476 = vperm.xlu0 %475, %v458
        %v477 = vpop.permute.xlu0 %476
        %v483 = vunpack.c.l.b16 %v451
        %v484 = vunpack.c.l.b16 %v452
        %v485 = vunpack.c.l.b16 %v453
        %v486 = vunpack.c.l.b16 %v454
        %v487 = vpack.c.b16 %v484, %v483
        %v488 = vpack.c.b16 %v486, %v485
        %v491 = vunpack.c.l.b16 %v449
        %v492 = vunpack.c.l.b16 %v450
        %v493 = vpack.c.b16 %v492, %v491
        %vm495 = vcmask 130048
        %v497 = vsel %vm495, %v487, 0
        %v500 = vsel %vm495, %v488, 0
        %502 = vmatprep.subr.bf16.mxu0 0
        %503 = vmatpush1.bf16.msra.mxu0 %v493
        %504 = vmatprep.subr.bf16.mxu0 0
        %505 = vmatpush1.bf16.msra.mxu0 0
        %506 = vmatprep.subr.bf16.mxu0 0
        %507 = vmatpush1.bf16.msra.mxu0 0
        %508 = vmatprep.subr.bf16.mxu0 0
        %509 = vmatpush1.bf16.msra.mxu0 0
        %510 = vmatprep.subr.bf16.mxu0 0
        %511 = vmatpush1.bf16.msra.mxu0 0
        %512 = vmatprep.subr.bf16.mxu0 0
        %513 = vmatpush1.bf16.msra.mxu0 0
        %514 = vmatprep.subr.bf16.mxu0 0
        %515 = vmatpush1.bf16.msra.mxu0 0
        %516 = vmatprep.subr.bf16.mxu0 0
        %517 = vmatpush1.bf16.msra.mxu0 0
        %518 = vmatprep.subr.bf16.mxu0 0
        %519 = vmatpush1.bf16.msra.mxu0 0
        %520 = vmatprep.subr.bf16.mxu0 0
        %521 = vmatpush1.bf16.msra.mxu0 0
        %522 = vmatprep.subr.bf16.mxu0 0
        %523 = vmatpush1.bf16.msra.mxu0 0
        %524 = vmatprep.subr.bf16.mxu0 0
        %525 = vmatpush1.bf16.msra.mxu0 0
        %526 = vmatprep.subr.bf16.mxu0 0
        %527 = vmatpush1.bf16.msra.mxu0 0
        %528 = vmatprep.subr.bf16.mxu0 0
        %529 = vmatpush1.bf16.msra.mxu0 0
        %530 = vmatprep.subr.bf16.mxu0 0
        %531 = vmatpush1.bf16.msra.mxu0 0
        %532 = vmatprep.subr.bf16.mxu0 0
        %533 = vmatpush1.bf16.msra.mxu0 0
        %534 = vmatprep.mubr.bf16.mxu0 0
        %535 = vmatmul.mubr.bf16.gmra.mrb[0].mxu0 %v497
        %v536 = vpop.f32.mrb[0].mxu0
        %v537 = vadd.f32 %v462, %v536
        %v538 = vpop.f32.mrb[0].mxu0
        %v539 = vpop.f32.mrb[0].mxu0
        %v540 = vadd.f32 %v467, %v539
        %v541 = vpop.f32.mrb[0].mxu0
        %542 = vmatprep.mubr.bf16.mxu0 0
        %543 = vmatmul.mubr.bf16.gmra.mrb[0].mxu0 %v500
        %v544 = vpop.f32.mrb[0].mxu0
        %v545 = vadd.f32 %v472, %v544
        %v546 = vpop.f32.mrb[0].mxu0
        %v547 = vpop.f32.mrb[0].mxu0
        %v548 = vadd.f32 %v477, %v547
        %v549 = vpop.f32.mrb[0].mxu0
        %550 = vdwg.mxu0
        %v551 = vmax.f32 %v537, 0.0
        %v552 = vmax.f32 %v540, 0.0
        %v553 = vmax.f32 %v545, 0.0
        %v554 = vmax.f32 %v548, 0.0
        %v555 = vpack.c.bf16 %v552, %v551
        %v556 = vpack.c.bf16 %v554, %v553
        %v557 = vld [vmem:[%s4] sm:$0xf]
        %v558 = vld [vmem:[%s4 + $0x4] sm:$0xf]
        %v559 = vld [vmem:[%s5] sm:$0xff]
        %v560 = vld [vmem:[%s5 + $0x8] sm:$0xff]
        %562 = vset.pattern.permute.xlu0 0
        %563 = vperm.xlu0 %562, %v559
        %v564 = vpop.permute.xlu0 %563
        %567 = vset.pattern.permute.xlu0 0
        %568 = vperm.xlu0 %567, %v560
        %v569 = vpop.permute.xlu0 %568
        %v573 = vunpack.c.l.b16 %v557
        %v574 = vunpack.c.l.b16 %v558
        %v575 = vpack.c.b16 %v574, %v573
        %vm576 = vcmask 261120
        %v578 = vsel %vm576, %v575, 0
        %580 = vmatprep.subr.bf16.mxu0 0
        %581 = vmatpush1.bf16.msra.mxu0 %v555
        %582 = vmatprep.subr.bf16.mxu0 0
        %583 = vmatpush1.bf16.msra.mxu0 %v556
        %584 = vmatprep.subr.bf16.mxu0 0
        %585 = vmatpush1.bf16.msra.mxu0 0
        %586 = vmatprep.subr.bf16.mxu0 0
        %587 = vmatpush1.bf16.msra.mxu0 0
        %588 = vmatprep.subr.bf16.mxu0 0
        %589 = vmatpush1.bf16.msra.mxu0 0
        %590 = vmatprep.subr.bf16.mxu0 0
        %591 = vmatpush1.bf16.msra.mxu0 0
        %592 = vmatprep.subr.bf16.mxu0 0
        %593 = vmatpush1.bf16.msra.mxu0 0
        %594 = vmatprep.subr.bf16.mxu0 0
        %595 = vmatpush1.bf16.msra.mxu0 0
        %596 = vmatprep.subr.bf16.mxu0 0
        %597 = vmatpush1.bf16.msra.mxu0 0
        %598 = vmatprep.subr.bf16.mxu0 0
        %599 = vmatpush1.bf16.msra.mxu0 0
        %600 = vmatprep.subr.bf16.mxu0 0
        %601 = vmatpush1.bf16.msra.mxu0 0
        %602 = vmatprep.subr.bf16.mxu0 0
        %603 = vmatpush1.bf16.msra.mxu0 0
        %604 = vmatprep.subr.bf16.mxu0 0
        %605 = vmatpush1.bf16.msra.mxu0 0
        %606 = vmatprep.subr.bf16.mxu0 0
        %607 = vmatpush1.bf16.msra.mxu0 0
        %608 = vmatprep.subr.bf16.mxu0 0
        %609 = vmatpush1.bf16.msra.mxu0 0
        %610 = vmatprep.subr.bf16.mxu0 0
        %611 = vmatpush1.bf16.msra.mxu0 0
        %612 = vmatprep.mubr.bf16.mxu0 0
        %613 = vmatmul.mubr.bf16.gmra.mrb[0].mxu0 %v578
        %v614 = vpop.f32.mrb[0].mxu0
        %v615 = vadd.f32 %v564, %v614
        %v616 = vpop.f32.mrb[0].mxu0
        %v617 = vpop.f32.mrb[0].mxu0
        %v618 = vadd.f32 %v569, %v617
        %v619 = vpop.f32.mrb[0].mxu0
        %620 = vdwg.mxu0
        %v621 = vmax.f32 %v615, 0.0
        %v622 = vmax.f32 %v618, 0.0
        %v623 = vpack.c.bf16 %v622, %v621
        %v624 = vld [vmem:[%s6] sm:$0xf]
        %v625 = vld [vmem:[%s7] sm:$0xff]
        %627 = vset.pattern.permute.xlu0 0
        %628 = vperm.xlu0 %627, %v625
        %v629 = vpop.permute.xlu0 %628
        %v632 = vsel %vm495, %v624, 0
        %634 = vmatprep.subr.bf16.mxu0 0
        %635 = vmatpush1.bf16.msra.mxu0 %v623
        %636 = vmatprep.subr.bf16.mxu0 0
        %637 = vmatpush1.bf16.msra.mxu0 0
        %638 = vmatprep.subr.bf16.mxu0 0
        %639 = vmatpush1.bf16.msra.mxu0 0
        %640 = vmatprep.subr.bf16.mxu0 0
        %641 = vmatpush1.bf16.msra.mxu0 0
        %642 = vmatprep.subr.bf16.mxu0 0
        %643 = vmatpush1.bf16.msra.mxu0 0
        %644 = vmatprep.subr.bf16.mxu0 0
        %645 = vmatpush1.bf16.msra.mxu0 0
        %646 = vmatprep.subr.bf16.mxu0 0
        %647 = vmatpush1.bf16.msra.mxu0 0
        %648 = vmatprep.subr.bf16.mxu0 0
        %649 = vmatpush1.bf16.msra.mxu0 0
        %650 = vmatprep.subr.bf16.mxu0 0
        %651 = vmatpush1.bf16.msra.mxu0 0
        %652 = vmatprep.subr.bf16.mxu0 0
        %653 = vmatpush1.bf16.msra.mxu0 0
        %654 = vmatprep.subr.bf16.mxu0 0
        %655 = vmatpush1.bf16.msra.mxu0 0
        %656 = vmatprep.subr.bf16.mxu0 0
        %657 = vmatpush1.bf16.msra.mxu0 0
        %658 = vmatprep.subr.bf16.mxu0 0
        %659 = vmatpush1.bf16.msra.mxu0 0
        %660 = vmatprep.subr.bf16.mxu0 0
        %661 = vmatpush1.bf16.msra.mxu0 0
        %662 = vmatprep.subr.bf16.mxu0 0
        %663 = vmatpush1.bf16.msra.mxu0 0
        %664 = vmatprep.subr.bf16.mxu0 0
        %665 = vmatpush1.bf16.msra.mxu0 0
        %666 = vmatprep.mubr.bf16.mxu0 0
        %667 = vmatmul.mubr.bf16.gmra.mrb[0].mxu0 %v632
        %v668 = vpop.f32.mrb[0].mxu0
        %v669 = vadd.f32 %v629, %v668
        %v670 = vpop.f32.mrb[0].mxu0
        %v671 = vpop.f32.mrb[0].mxu0
        %v672 = vpop.f32.mrb[0].mxu0
        %673 = vdwg.mxu0
        %v674 = vmax.f32 %v669, 0.0
        %v675 = vpack.c.bf16 %v674, %v674
        %v676 = vld [vmem:[%s8] sm:$0x1]
        %v677 = vld [vmem:[%s9] sm:$0x1]
        %v678 = vld [vmem:[#allocation2] sm:$0x1]
        %v679 = vld [vmem:[%s447] sm:$0xf]
        %vm680 = vcmask 64512
        %v682 = vsel %vm680, %v677, 0
        %vm684 = vcmask 1043456
        %v686 = vsel %vm684, %v675, 0
        %688 = vmatprep.subr.bf16.mxu0 0
        %689 = vmatpush1.bf16.msra.mxu0 %v686
        %690 = vmatprep.subr.bf16.mxu0 0
        %691 = vmatpush1.bf16.msra.mxu0 0
        %692 = vmatprep.subr.bf16.mxu0 0
        %693 = vmatpush1.bf16.msra.mxu0 0
        %694 = vmatprep.subr.bf16.mxu0 0
        %695 = vmatpush1.bf16.msra.mxu0 0
        %696 = vmatprep.subr.bf16.mxu0 0
        %697 = vmatpush1.bf16.msra.mxu0 0
        %698 = vmatprep.subr.bf16.mxu0 0
        %699 = vmatpush1.bf16.msra.mxu0 0
        %700 = vmatprep.subr.bf16.mxu0 0
        %701 = vmatpush1.bf16.msra.mxu0 0
        %702 = vmatprep.subr.bf16.mxu0 0
        %703 = vmatpush1.bf16.msra.mxu0 0
        %704 = vmatprep.subr.bf16.mxu0 0
        %705 = vmatpush1.bf16.msra.mxu0 0
        %706 = vmatprep.subr.bf16.mxu0 0
        %707 = vmatpush1.bf16.msra.mxu0 0
        %708 = vmatprep.subr.bf16.mxu0 0
        %709 = vmatpush1.bf16.msra.mxu0 0
        %710 = vmatprep.subr.bf16.mxu0 0
        %711 = vmatpush1.bf16.msra.mxu0 0
        %712 = vmatprep.subr.bf16.mxu0 0
        %713 = vmatpush1.bf16.msra.mxu0 0
        %714 = vmatprep.subr.bf16.mxu0 0
        %715 = vmatpush1.bf16.msra.mxu0 0
        %716 = vmatprep.subr.bf16.mxu0 0
        %717 = vmatpush1.bf16.msra.mxu0 0
        %718 = vmatprep.subr.bf16.mxu0 0
        %719 = vmatpush1.bf16.msra.mxu0 0
        %720 = vmatprep.mubr.bf16.mxu0 0
        %721 = vmatmul.mubr.bf16.gmra.mrb[0].mxu0 %v682
        %v722 = vpop.f32.mrb[0].mxu0
        %v723 = vadd.f32 0.0, %v722
        %v724 = vpop.f32.mrb[0].mxu0
        %v725 = vpop.f32.mrb[0].mxu0
        %v726 = vpop.f32.mrb[0].mxu0
        %727 = vdwg.mxu0
        %v729 = vsel %vm680, %v676, 0
        %v732 = vsel %vm684, %v679, 0
        %734 = vmatprep.subr.bf16.mxu0 0
        %735 = vmatpush1.bf16.msra.mxu0 %v732
        %736 = vmatprep.subr.bf16.mxu0 0
        %737 = vmatpush1.bf16.msra.mxu0 0
        %738 = vmatprep.subr.bf16.mxu0 0
        %739 = vmatpush1.bf16.msra.mxu0 0
        %740 = vmatprep.subr.bf16.mxu0 0
        %741 = vmatpush1.bf16.msra.mxu0 0
        %742 = vmatprep.subr.bf16.mxu0 0
        %743 = vmatpush1.bf16.msra.mxu0 0
        %744 = vmatprep.subr.bf16.mxu0 0
        %745 = vmatpush1.bf16.msra.mxu0 0
        %746 = vmatprep.subr.bf16.mxu0 0
        %747 = vmatpush1.bf16.msra.mxu0 0
        %748 = vmatprep.subr.bf16.mxu0 0
        %749 = vmatpush1.bf16.msra.mxu0 0
        %750 = vmatprep.subr.bf16.mxu0 0
        %751 = vmatpush1.bf16.msra.mxu0 0
        %752 = vmatprep.subr.bf16.mxu0 0
        %753 = vmatpush1.bf16.msra.mxu0 0
        %754 = vmatprep.subr.bf16.mxu0 0
        %755 = vmatpush1.bf16.msra.mxu0 0
        %756 = vmatprep.subr.bf16.mxu0 0
        %757 = vmatpush1.bf16.msra.mxu0 0
        %758 = vmatprep.subr.bf16.mxu0 0
        %759 = vmatpush1.bf16.msra.mxu0 0
        %760 = vmatprep.subr.bf16.mxu0 0
        %761 = vmatpush1.bf16.msra.mxu0 0
        %762 = vmatprep.subr.bf16.mxu0 0
        %763 = vmatpush1.bf16.msra.mxu0 0
        %764 = vmatprep.subr.bf16.mxu0 0
        %765 = vmatpush1.bf16.msra.mxu0 0
        %766 = vmatprep.mubr.bf16.mxu0 0
        %767 = vmatmul.mubr.bf16.gmra.mrb[0].mxu0 %v729
        %v768 = vpop.f32.mrb[0].mxu0
        %v769 = vadd.f32 %v723, %v768
        %v770 = vpop.f32.mrb[0].mxu0
        %v771 = vpop.f32.mrb[0].mxu0
        %v772 = vpop.f32.mrb[0].mxu0
        %773 = vdwg.mxu0
        %775 = vset.pattern.permute.xlu0 0
        %776 = vperm.xlu0 %775, %v678
        %v777 = vpop.permute.xlu0 %776
        %v779 = vlaneseq
        %v780 = vshrl.u32 %v779, 7
        %v781 = vsub.s32 0, %v780
        %v782 = vrot.slane %v777, %v781
        %v783 = vadd.f32 %v769, %v782
        %v784 = vsub.f32 0.0, %v783
        %v785 = vmul.f32 %v784, 1.442695
        %v786 = vpow.pop %v785
        %v787 = vadd.f32 %v786, 1.0
        %v788 = vrcp.pop %v787
        %789 = vst [vmem:[%s443] sm:$0x1] %v788
        %s790 = sand.u32 %s276, 1
        %s791 = scalar_lea.sflag [#allocation5], %s790
        %s792 = sand.u32 %s276, 1
        %s793 = scalar_lea.vmem [#allocation4], %s792
        // Predicated region
        $region106: #{tpu_custom_call.1} parent=100 // pred_check
          %p794 = pneg %p286
        $region107: #{tpu_custom_call.1} parent=100 // pred_check_branch
          %796 = sbr.rel (%p794) target = $region109
        $region108: #{tpu_custom_call.1} parent=100 // pred_region
          %s798 = ssub.s32 16, 16
          %799 = vsyncadd %s791, %s798
          %s800 = smul.addr %s27, 16
          %s801 = scalar_lea.hbm %s11, %s800
          %s803 = sshll.u32 %s793, 4
          %s804 = int_to_ptr.vmem [resolvable:$true] %s803
          %806 = dma.vmem_to_hbm [thread:$0]  %s804, 16, %s801, %s791
        $region109: #{tpu_custom_call.1} parent=100 // pred_fallthru
          _
      $region101: #{tpu_custom_call.1} parent=5 // pred_fallthru
        _
      %p807 = scmp.le.s32.totalorder 2, %s22
      // Predicated region
      $region110: #{tpu_custom_call.1} parent=5 // pred_check
        %p808 = pneg %p807
      $region111: #{tpu_custom_call.1} parent=5 // pred_check_branch
        %810 = sbr.rel (%p808) target = $region113
      $region112: #{tpu_custom_call.1} parent=5 // pred_region
        %s811 = ssub.s32 %s22, 2
        // Predicated region
        $region114: #{tpu_custom_call.1} parent=112 // pred_check
          %p812 = pneg %p292
        $region115: #{tpu_custom_call.1} parent=112 // pred_check_branch
          %814 = sbr.rel (%p812) target = $region117
        $region116: #{tpu_custom_call.1} parent=112 // pred_region
          %s815 = sand.u32 %s277, 1
          %s816 = scalar_lea.sflag [#allocation5], %s815
          %s817 = sand.u32 %s277, 1
          %s818 = scalar_lea.vmem [#allocation4], %s817
          %819 = dma.done %s816, 16
        $region117: #{tpu_custom_call.1} parent=112 // pred_fallthru
          _
      $region113: #{tpu_custom_call.1} parent=5 // pred_fallthru
        _
    $region6: #{tpu_custom_call.1} parent=1 // loop_footer
      %s26 = sadd.s32 1, %s22
    $region7: #{tpu_custom_call.1} parent=1 // loop_footer_branch
      %21 = sbr.rel target = $region3
    $region8: #{tpu_custom_call.1} parent=1 // loop_exit
      _
    %820 = vsyncpa [#allocation5], 1
    %s821 = scalar_lea.sflag [#allocation5], 1
    %822 = vsyncpa %s821, 1

</llo_original>
